<compile_context>
chip_gen: v5e
topology: v5e:2x2
jax: 0.10.0
libtpu: 0.0.40
codegen_flags: <defaults>
</compile_context>

<pallas_src>
import functools

import jax
import jax.numpy as jnp
from jax.experimental import pallas as pl
from jax.experimental.pallas import tpu as pltpu


# Per-channel normalization constants and level weights from the PyTorch forward.
_MEANS = (0.18194012, 0.19730986, 0.19899204, 0.36337873)
_STDS = (0.27229501, 0.25477614, 0.25042932, 0.20255798)
_WEIGHTS = (8.0, 1.0, 1.0, 1.0, 1.0)


def _masked_l1_kernel(x_ref, y_ref, m_ref, out_ref, acc_ref, *,
                      C, THW, l_tile, needs_lane_mask):
    """Per-(batch, channel) sums of |(x_norm - y_norm) * mask|.

    Grid is (B, num_lane_chunks): one batch element per outer step, lane
    chunks of the flattened T*H*W axis inner.  acc_ref is an f32 VMEM scratch
    of shape (C, l_tile): the hot loop is pure VPU adds; the cross-lane
    reduction to (C,) happens once, under pl.when at the last chunk.
    """
    j = pl.program_id(1)

    @pl.when(j == 0)
    def _():
        acc_ref[...] = jnp.zeros_like(acc_ref)

    x = x_ref[0].astype(jnp.float32)      # (C, l_tile)
    y = y_ref[0].astype(jnp.float32)      # (C, l_tile)
    m = m_ref[0].astype(jnp.float32)      # (1, l_tile) -> broadcast over C

    # Per-channel (mean, 1/std) column vectors built from compile-time
    # constants; broadcast along lanes inside the VPU ops.
    ch = jax.lax.broadcasted_iota(jnp.int32, (C, 1), 0)
    mean = jnp.full((C, 1), _MEANS[0], jnp.float32)
    inv_std = jnp.full((C, 1), 1.0 / _STDS[0], jnp.float32)
    for c in range(1, C):
        mean = jnp.where(ch == c, jnp.float32(_MEANS[c]), mean)
        inv_std = jnp.where(ch == c, jnp.float32(1.0 / _STDS[c]), inv_std)

    xn = (x - mean) * inv_std
    yn = (y - mean) * inv_std
    # (xn - yn) * m == xn*m - yn*m exactly for the 0/1 masks this loss uses.
    d = jnp.abs((xn - yn) * m)

    if needs_lane_mask:
        # Ragged tail of the flattened T*H*W axis handled in-kernel instead of
        # padding the arrays in HBM.
        lane = jax.lax.broadcasted_iota(jnp.int32, (C, l_tile), 1)
        d = jnp.where(j * l_tile + lane < THW, d, 0.0)

    acc_ref[...] += d

    @pl.when(j == pl.num_programs(1) - 1)
    def _():
        out_ref[0, 0, :] = jnp.sum(acc_ref[...], axis=1)


def _per_channel_abs_sums(x, y, mask, *, vmem_budget_bytes=12 * 1024 * 1024,
                          max_lane_tile=None):
    B, C, T, H, W = x.shape
    assert y.shape == x.shape
    assert mask.shape == (B, 1, T, H, W)
    THW = T * H * W

    # Free reshapes of contiguous trailing dims; the (B,1,THW) mask is
    # broadcast across channels by BlockSpec + in-kernel broadcast
    # (no repeat_interleave materialized in HBM).
    x3 = x.reshape(B, C, THW)
    y3 = y.reshape(B, C, THW)
    m3 = mask.reshape(B, 1, THW)

    # Lane tile: lane-dense (multiple of 128, or the full THW extent) and as
    # large as the VMEM budget allows.  Budget counts double-buffered
    # x/y/mask tiles plus the f32 accumulator scratch; the 12 MiB default
    # stays inside even v5e's 16 MiB default scoped VMEM (and v7x's 32 MiB).
    per_lane_bytes = (2 * C * x3.dtype.itemsize + 2 * C * y3.dtype.itemsize
                      + 2 * m3.dtype.itemsize + C * 4)
    l = vmem_budget_bytes // per_lane_bytes
    if max_lane_tile is not None:
        l = min(l, max_lane_tile)
    if l >= THW:
        l_tile = THW
    else:
        l_tile = max(128, (l // 128) * 128)
        if l_tile >= THW:
            l_tile = THW
    n_l = pl.cdiv(THW, l_tile)
    needs_lane_mask = (THW % l_tile) != 0

    kernel = functools.partial(_masked_l1_kernel, C=C, THW=THW,
                               l_tile=l_tile, needs_lane_mask=needs_lane_mask)

    sums = pl.pallas_call(
        kernel,
        out_shape=jax.ShapeDtypeStruct((B, 1, C), jnp.float32),
        grid_spec=pltpu.PrefetchScalarGridSpec(
            num_scalar_prefetch=0,
            grid=(B, n_l),
            in_specs=[
                pl.BlockSpec((1, C, l_tile), lambda b, j: (b, 0, j)),
                pl.BlockSpec((1, C, l_tile), lambda b, j: (b, 0, j)),
                pl.BlockSpec((1, 1, l_tile), lambda b, j: (b, 0, j)),
            ],
            out_specs=pl.BlockSpec((1, 1, C), lambda b, j: (b, 0, 0)),
            scratch_shapes=[pltpu.VMEM((C, l_tile), jnp.float32)],
        ),
        compiler_params=pltpu.CompilerParams(
            # Batch elements are independent -> shard them across TensorCores
            # (2 on v7x); the lane-chunk reduction axis stays sequential.
            dimension_semantics=("parallel", "arbitrary"),
        ),
    )(x3, y3, m3)

    return sums.reshape(B, C)


def masked_vgg_loss(x, y, mask, **kwargs):
    """MaskedVGGLoss.forward — Pallas-covered portion (see TODO at top)."""
    B, C, T, H, W = x.shape
    assert C == 4, "MaskedVGGLoss hard-codes 4 input channels"
    s = _per_channel_abs_sums(x, y, mask, **kwargs).sum(axis=0)   # (C,)
    n_stream = 3 * B * T * H * W        # numel of each (B*T, 3, H, W) stream
    l1_bgr = (s[0] + s[1] + s[2]) / n_stream
    l1_nif = 3.0 * s[3] / n_stream      # NIF stream = channel 3 repeated 3x
    # TODO(synk): pretrained-VGG19 feature levels (weights[1:]) omitted —
    #             torchvision weights unavailable without network/file access.
    return _WEIGHTS[0] * (l1_bgr + l1_nif)


if __name__ == "__main__":
    key = jax.random.PRNGKey(0)
    B, C, T, H, W = 2, 4, 4, 16, 16
    k1, k2, k3 = jax.random.split(key, 3)

    x = jax.random.normal(k1, (B, C, T, H, W), dtype=jnp.float32)
    y = jax.random.normal(k2, (B, C, T, H, W), dtype=jnp.float32)
    mask = (jax.random.uniform(k3, (B, 1, T, H, W)) > 0.5).astype(jnp.float32)

    out = jax.block_until_ready(masked_vgg_loss(x, y, mask))
    # Also exercise the multi-chunk reduction path (accumulate across j).
    out_chunked = jax.block_until_ready(
        masked_vgg_loss(x, y, mask, max_lane_tile=256))

    # Pure-JAX reference mirroring the PyTorch forward (minus the pretrained
    # VGG19 pyramid — identity "features", level-0 weight only).
    mean = jnp.asarray(_MEANS, jnp.float32).reshape(1, C, 1, 1, 1)
    std = jnp.asarray(_STDS, jnp.float32).reshape(1, C, 1, 1, 1)
    m_rep = jnp.repeat(mask, C, axis=1)
    xn = (x - mean) / std * m_rep
    yn = (y - mean) / std * m_rep
    xBGR = xn[:, 0:3].transpose(0, 2, 1, 3, 4).reshape(B * T, 3, H, W)
    yBGR = yn[:, 0:3].transpose(0, 2, 1, 3, 4).reshape(B * T, 3, H, W)
    xNIF = jnp.repeat(xn[:, 3:4], 3, axis=1).transpose(0, 2, 1, 3, 4).reshape(B * T, 3, H, W)
    yNIF = jnp.repeat(yn[:, 3:4], 3, axis=1).transpose(0, 2, 1, 3, 4).reshape(B * T, 3, H, W)
    ref = _WEIGHTS[0] * (jnp.mean(jnp.abs(xBGR - yBGR))
                         + jnp.mean(jnp.abs(xNIF - yNIF)))

    assert jnp.allclose(out, ref, rtol=2e-5, atol=1e-6), (out, ref)
    assert jnp.allclose(out_chunked, ref, rtol=2e-5, atol=1e-6), (out_chunked, ref)
    print("KERNEL_OK")
</pallas_src>

<mosaic_0001>
module attributes {stable_mosaic.version = 11 : i64} {
  func.func @_masked_l1_kernel(%arg0: i32, %arg1: i32, %arg2: memref<1x4x1024xf32, #tpu.memory_space<vmem>>, %arg3: memref<1x4x1024xf32, #tpu.memory_space<vmem>>, %arg4: memref<1x1x1024xf32, #tpu.memory_space<vmem>>, %arg5: memref<1x1x4xf32, #tpu.memory_space<vmem>>, %arg6: memref<4x1024xf32, #tpu.memory_space<vmem>>) attributes {dimension_semantics = [#tpu.dimension_semantics<parallel>, #tpu.dimension_semantics<arbitrary>], iteration_bounds = array<i64: 2, 1>, scalar_prefetch = 0 : i64, scratch_operands = 1 : i64, tpu.core_type = #tpu.core_type<tc>, window_params = [{transform_indices = @transform_0, window_bounds = array<i64: 1, 4, 1024>}, {transform_indices = @transform_1, window_bounds = array<i64: 1, 4, 1024>}, {transform_indices = @transform_2, window_bounds = array<i64: 1, 1, 1024>}, {transform_indices = @transform_3, window_bounds = array<i64: 1, 1, 4>}]} {
    %c0_i32 = arith.constant 0 : i32
    %0 = arith.cmpi eq, %arg1, %c0_i32 : i32
    %1 = arith.extui %0 : i1 to i32
    %c0_i32_0 = arith.constant 0 : i32
    %2 = arith.cmpi ne, %1, %c0_i32_0 : i32
    scf.if %2 {
      %cst_25 = arith.constant 0.000000e+00 : f32
      %54 = vector.broadcast %cst_25 : f32 to vector<4x1024xf32>
      %c0_26 = arith.constant 0 : index
      %c0_27 = arith.constant 0 : index
      %55 = vector.load %arg6[%c0_26, %c0_27] : memref<4x1024xf32, #tpu.memory_space<vmem>>, vector<4x1024xf32>
      tpu.vector_store %arg6[%c0_26, %c0_27], %54 {strides = array<i32>} : memref<4x1024xf32, #tpu.memory_space<vmem>>, vector<4x1024xf32>,
    } else {
    }
    %c0 = arith.constant 0 : index
    %c0_1 = arith.constant 0 : index
    %c0_2 = arith.constant 0 : index
    %3 = vector.load %arg2[%c0, %c0_1, %c0_2] : memref<1x4x1024xf32, #tpu.memory_space<vmem>>, vector<1x4x1024xf32>
    %4 = vector.shape_cast %3 : vector<1x4x1024xf32> to vector<4x1024xf32>
    %c0_3 = arith.constant 0 : index
    %c0_4 = arith.constant 0 : index
    %c0_5 = arith.constant 0 : index
    %5 = vector.load %arg3[%c0_3, %c0_4, %c0_5] : memref<1x4x1024xf32, #tpu.memory_space<vmem>>, vector<1x4x1024xf32>
    %6 = vector.shape_cast %5 : vector<1x4x1024xf32> to vector<4x1024xf32>
    %c0_6 = arith.constant 0 : index
    %c0_7 = arith.constant 0 : index
    %c0_8 = arith.constant 0 : index
    %7 = vector.load %arg4[%c0_6, %c0_7, %c0_8] : memref<1x1x1024xf32, #tpu.memory_space<vmem>>, vector<1x1x1024xf32>
    %8 = vector.shape_cast %7 : vector<1x1x1024xf32> to vector<1x1024xf32>
    %9 = tpu.iota {dimensions = array<i32: 0>} : vector<4x1xi32>
    %cst = arith.constant 0.181940123 : f32
    %10 = vector.broadcast %cst : f32 to vector<4x1xf32>
    %cst_9 = arith.constant 3.6724875 : f32
    %11 = vector.broadcast %cst_9 : f32 to vector<4x1xf32>
    %c1_i32 = arith.constant 1 : i32
    %12 = vector.broadcast %c1_i32 : i32 to vector<4x1xi32>
    %13 = arith.cmpi eq, %9, %12 : vector<4x1xi32>
    %cst_10 = arith.constant 0.197309867 : f32
    %14 = vector.broadcast %cst_10 : f32 to vector<4x1xf32>
    %15 = arith.select %13, %14, %10 : vector<4x1xi1>, vector<4x1xf32>
    %c1_i32_11 = arith.constant 1 : i32
    %16 = vector.broadcast %c1_i32_11 : i32 to vector<4x1xi32>
    %17 = arith.cmpi eq, %9, %16 : vector<4x1xi32>
    %cst_12 = arith.constant 3.92501426 : f32
    %18 = vector.broadcast %cst_12 : f32 to vector<4x1xf32>
    %19 = arith.select %17, %18, %11 : vector<4x1xi1>, vector<4x1xf32>
    %c2_i32 = arith.constant 2 : i32
    %20 = vector.broadcast %c2_i32 : i32 to vector<4x1xi32>
    %21 = arith.cmpi eq, %9, %20 : vector<4x1xi32>
    %cst_13 = arith.constant 0.198992044 : f32
    %22 = vector.broadcast %cst_13 : f32 to vector<4x1xf32>
    %23 = arith.select %21, %22, %15 : vector<4x1xi1>, vector<4x1xf32>
    %c2_i32_14 = arith.constant 2 : i32
    %24 = vector.broadcast %c2_i32_14 : i32 to vector<4x1xi32>
    %25 = arith.cmpi eq, %9, %24 : vector<4x1xi32>
    %cst_15 = arith.constant 3.9931426 : f32
    %26 = vector.broadcast %cst_15 : f32 to vector<4x1xf32>
    %27 = arith.select %25, %26, %19 : vector<4x1xi1>, vector<4x1xf32>
    %c3_i32 = arith.constant 3 : i32
    %28 = vector.broadcast %c3_i32 : i32 to vector<4x1xi32>
    %29 = arith.cmpi eq, %9, %28 : vector<4x1xi32>
    %cst_16 = arith.constant 0.363378733 : f32
    %30 = vector.broadcast %cst_16 : f32 to vector<4x1xf32>
    %31 = arith.select %29, %30, %23 : vector<4x1xi1>, vector<4x1xf32>
    %c3_i32_17 = arith.constant 3 : i32
    %32 = vector.broadcast %c3_i32_17 : i32 to vector<4x1xi32>
    %33 = arith.cmpi eq, %9, %32 : vector<4x1xi32>
    %cst_18 = arith.constant 4.93685818 : f32
    %34 = vector.broadcast %cst_18 : f32 to vector<4x1xf32>
    %35 = arith.select %33, %34, %27 : vector<4x1xi1>, vector<4x1xf32>
    %36 = vector.broadcast %31 : vector<4x1xf32> to vector<4x1024xf32>
    %37 = arith.subf %4, %36 : vector<4x1024xf32>
    %38 = vector.broadcast %35 : vector<4x1xf32> to vector<4x1024xf32>
    %39 = arith.mulf %37, %38 : vector<4x1024xf32>
    %40 = vector.broadcast %31 : vector<4x1xf32> to vector<4x1024xf32>
    %41 = arith.subf %6, %40 : vector<4x1024xf32>
    %42 = vector.broadcast %35 : vector<4x1xf32> to vector<4x1024xf32>
    %43 = arith.mulf %41, %42 : vector<4x1024xf32>
    %44 = arith.subf %39, %43 : vector<4x1024xf32>
    %45 = vector.broadcast %8 : vector<1x1024xf32> to vector<4x1024xf32>
    %46 = arith.mulf %44, %45 : vector<4x1024xf32>
    %47 = math.absf %46 : vector<4x1024xf32>
    %c0_19 = arith.constant 0 : index
    %c0_20 = arith.constant 0 : index
    %48 = vector.load %arg6[%c0_19, %c0_20] : memref<4x1024xf32, #tpu.memory_space<vmem>>, vector<4x1024xf32>
    %49 = arith.addf %48, %47 : vector<4x1024xf32>
    %c0_21 = arith.constant 0 : index
    %c0_22 = arith.constant 0 : index
    %50 = vector.load %arg6[%c0_21, %c0_22] : memref<4x1024xf32, #tpu.memory_space<vmem>>, vector<4x1024xf32>
    tpu.vector_store %arg6[%c0_21, %c0_22], %49 {strides = array<i32>} : memref<4x1024xf32, #tpu.memory_space<vmem>>, vector<4x1024xf32>,
    %c0_i32_23 = arith.constant 0 : i32
    %51 = arith.cmpi eq, %arg1, %c0_i32_23 : i32
    %52 = arith.extui %51 : i1 to i32
    %c0_i32_24 = arith.constant 0 : i32
    %53 = arith.cmpi ne, %52, %c0_i32_24 : i32
    scf.if %53 {
      %c0_25 = arith.constant 0 : index
      %c0_26 = arith.constant 0 : index
      %54 = vector.load %arg6[%c0_25, %c0_26] : memref<4x1024xf32, #tpu.memory_space<vmem>>, vector<4x1024xf32>
      %cst_27 = arith.constant dense<0.000000e+00> : vector<4xf32>
      %55 = vector.multi_reduction <add>, %54, %cst_27 [1] : vector<4x1024xf32> to vector<4xf32>
      %c0_28 = arith.constant 0 : index
      %c0_29 = arith.constant 0 : index
      %c0_30 = arith.constant 0 : index
      %56 = vector.load %arg5[%c0_28, %c0_29, %c0_30] : memref<1x1x4xf32, #tpu.memory_space<vmem>>, vector<1x1x4xf32>
      %57 = vector.shape_cast %56 : vector<1x1x4xf32> to vector<4xf32>
      %58 = vector.shape_cast %55 : vector<4xf32> to vector<1x1x4xf32>
      tpu.vector_store %arg5[%c0_28, %c0_29, %c0_30], %58 {strides = array<i32>} : memref<1x1x4xf32, #tpu.memory_space<vmem>>, vector<1x1x4xf32>,
    } else {
    }
    return
  }
  func.func @transform_0(%arg0: i32, %arg1: i32) -> (i32, i32, i32) {
    %c0_i32 = arith.constant 0 : i32
    %c0_i32_0 = arith.constant 0 : i32
    return %arg0, %c0_i32, %arg1 : i32, i32, i32
  }
  func.func @transform_1(%arg0: i32, %arg1: i32) -> (i32, i32, i32) {
    %c0_i32 = arith.constant 0 : i32
    %c0_i32_0 = arith.constant 0 : i32
    return %arg0, %c0_i32, %arg1 : i32, i32, i32
  }
  func.func @transform_2(%arg0: i32, %arg1: i32) -> (i32, i32, i32) {
    %c0_i32 = arith.constant 0 : i32
    %c0_i32_0 = arith.constant 0 : i32
    return %arg0, %c0_i32, %arg1 : i32, i32, i32
  }
  func.func @transform_3(%arg0: i32, %arg1: i32) -> (i32, i32, i32) {
    %c0_i32 = arith.constant 0 : i32
    %c0_i32_0 = arith.constant 0 : i32
    %c0_i32_1 = arith.constant 0 : i32
    return %arg0, %c0_i32, %c0_i32_0 : i32, i32, i32
  }
}

</mosaic_0001>

<llo_original>
// kernel: tpu_custom_call.1
$region0: #{tpu_custom_call.1}
  #allocation0 [shape = 'u32[]', space=smem, size = 0x4, offset = 0x4, fixed_abs, tag = 'smem constant byte address 0x4 - core index']
  #allocation1 [shape = 'u32[72,128]{1,0:T(1,128)}', space=vmem, size = 0x9000, scoped, tag = 'internal scratch']
  #allocation2 [shape = 'f32[4,1024]{1,0:T(4,128)}', space=vmem, size = 0x4000, scoped, tag = 'scratch operand']
  %s0 = inlined_call_operand.hbm [shape: f32[2,4,1024], index: 0, kind: input, shape index: {}]
  %s1 = inlined_call_operand.hbm [shape: f32[2,4,1024], index: 1, kind: input, shape index: {}]
  %s2 = inlined_call_operand.hbm [shape: f32[2,1,1024], index: 2, kind: input, shape index: {}]
  %s3 = inlined_call_operand.hbm [shape: f32[2,1,4], index: 3, kind: output, shape index: {}]
  %s4 = sld [smem:[#allocation0]]
  $region65: #{tpu_custom_call.1} parent=0
    _
  %s6 = ssub.s32 1, %s4
  %s7 = scalar_select 0, %s6, %s4
  $region1: #{tpu_custom_call.1} parent=0
    #allocation3 [shape = 'u8[32768]{0}', space=vmem, size = 0x8000, scoped, tag = 'input window, operand 0']
    #allocation4 [shape = 's32[2]{0}', space=sflag, size = 0x8, scoped, tag = 'scoped memory for tpu_custom_call.1']
    #allocation5 [shape = 's32[2]{0}', space=sflag, size = 0x8, scoped, tag = 'scoped memory for tpu_custom_call.1']
    #allocation6 [shape = 'u8[32768]{0}', space=vmem, size = 0x8000, scoped, tag = 'input window, operand 1']
    #allocation7 [shape = 's32[2]{0}', space=sflag, size = 0x8, scoped, tag = 'scoped memory for tpu_custom_call.1']
    #allocation8 [shape = 'u8[8192]{0}', space=vmem, size = 0x2000, scoped, tag = 'input window, operand 2']
    #allocation9 [shape = 'u8[1024]{0}', space=vmem, size = 0x400, scoped, tag = 'output window, operand 0']
    %8 = vsyncpa [#allocation4], 0
    %s9 = scalar_lea.sflag [#allocation4], 1
    %10 = vsyncpa %s9, 0
    %11 = vsyncpa [#allocation7], 0
    %s12 = scalar_lea.sflag [#allocation7], 1
    %13 = vsyncpa %s12, 0
    %14 = vsyncpa [#allocation5], 0
    %s15 = scalar_lea.sflag [#allocation5], 1
    %16 = vsyncpa %s15, 0
    loop: start=0, step=1, limit=4
    $region2: #{tpu_custom_call.1} parent=1 // loop_pre_header
      _
    $region3: #{tpu_custom_call.1} parent=1 // loop_header
      %s18 = sphi 0, %s22
      %p19 = scmp.ge.s32.totalorder %s18, 4
      %s25 = sphi 0, %s37
      %s26 = sphi 0, %s33
      %s27 = sphi 0, %s25
      %s28 = sphi 0, %s26
      %s29 = sphi 0, %s27
      %s30 = sphi 0, %s28
      %s42 = sphi 0, %s44
      %s45 = sphi 0, %s42
      %s46 = sphi 0, %s45
      %s62 = sphi 0, %s46
      %s70 = sphi 0, %s72
      %s73 = sphi 0, %s70
      %s74 = sphi 0, %s73
      %s90 = sphi 0, %s74
      %s98 = sphi 0, %s100
      %s101 = sphi 0, %s98
      %s102 = sphi 0, %s101
      %s118 = sphi 0, %s102
      %s124 = sphi 0, %s126
      %s127 = sphi 0, %s124
      %s128 = sphi 0, %s127
      %s144 = sphi 0, %s128
    $region4: #{tpu_custom_call.1} parent=1 // loop_header_branch
      %21 = sbr.rel (%p19) target = $region8
    $region5: #{tpu_custom_call.1} parent=1 // loop_body
      %s23 = ssub.s32 %s18, 1
      %s24 = ssub.s32 %s18, 2
      %s31 = sadd.s32 1, %s26
      %p32 = scmp.ge.s32.totalorder %s31, 1
      %s33 = scalar_select %p32, 0, %s31
      %s34 = sadd.s32 1, %s25
      %s35 = scalar_select %p32, %s34, %s25
      %p36 = scmp.ge.s32.totalorder %s35, 2
      %s37 = scalar_select %p36, 0, %s35
      %s38 = ssub.s32 %s25, %s37
      %s39 = ssub.s32 %s26, %s33
      %s40 = sor.u32 %s38, %s39
      %p41 = scmp.eq.s32.totalorder %s40, 0
      %s43 = sadd.s32 %s42, 1
      %s44 = scalar_select %p41, %s42, %s43
      %p47 = pneg %p41
      %p48 = scmp.eq.s32.totalorder %s18, 1
      %p49 = por %p47, %p48
      %p50 = scmp.ne.s32.totalorder %s42, %s45
      %p51 = scmp.eq.s32.totalorder %s18, 0
      %p52 = por %p50, %p51
      %p53 = scmp.ne.s32.totalorder %s42, %s45
      %p54 = scmp.eq.s32.totalorder %s23, 1
      %p55 = por %p53, %p54
      %p56 = scmp.ne.s32.totalorder %s45, %s46
      %p57 = scmp.eq.s32.totalorder %s23, 0
      %p58 = por %p56, %p57
      %p59 = scmp.ne.s32.totalorder %s45, %s46
      %p60 = scmp.eq.s32.totalorder %s24, 1
      %p61 = por %p59, %p60
      %p63 = scmp.ne.s32.totalorder %s46, %s62
      %p64 = scmp.eq.s32.totalorder %s24, 0
      %p65 = por %p63, %p64
      %s66 = ssub.s32 %s25, %s37
      %s67 = ssub.s32 %s26, %s33
      %s68 = sor.u32 %s66, %s67
      %p69 = scmp.eq.s32.totalorder %s68, 0
      %s71 = sadd.s32 %s70, 1
      %s72 = scalar_select %p69, %s70, %s71
      %p75 = pneg %p69
      %p76 = scmp.eq.s32.totalorder %s18, 1
      %p77 = por %p75, %p76
      %p78 = scmp.ne.s32.totalorder %s70, %s73
      %p79 = scmp.eq.s32.totalorder %s18, 0
      %p80 = por %p78, %p79
      %p81 = scmp.ne.s32.totalorder %s70, %s73
      %p82 = scmp.eq.s32.totalorder %s23, 1
      %p83 = por %p81, %p82
      %p84 = scmp.ne.s32.totalorder %s73, %s74
      %p85 = scmp.eq.s32.totalorder %s23, 0
      %p86 = por %p84, %p85
      %p87 = scmp.ne.s32.totalorder %s73, %s74
      %p88 = scmp.eq.s32.totalorder %s24, 1
      %p89 = por %p87, %p88
      %p91 = scmp.ne.s32.totalorder %s74, %s90
      %p92 = scmp.eq.s32.totalorder %s24, 0
      %p93 = por %p91, %p92
      %s94 = ssub.s32 %s25, %s37
      %s95 = ssub.s32 %s26, %s33
      %s96 = sor.u32 %s94, %s95
      %p97 = scmp.eq.s32.totalorder %s96, 0
      %s99 = sadd.s32 %s98, 1
      %s100 = scalar_select %p97, %s98, %s99
      %p103 = pneg %p97
      %p104 = scmp.eq.s32.totalorder %s18, 1
      %p105 = por %p103, %p104
      %p106 = scmp.ne.s32.totalorder %s98, %s101
      %p107 = scmp.eq.s32.totalorder %s18, 0
      %p108 = por %p106, %p107
      %p109 = scmp.ne.s32.totalorder %s98, %s101
      %p110 = scmp.eq.s32.totalorder %s23, 1
      %p111 = por %p109, %p110
      %p112 = scmp.ne.s32.totalorder %s101, %s102
      %p113 = scmp.eq.s32.totalorder %s23, 0
      %p114 = por %p112, %p113
      %p115 = scmp.ne.s32.totalorder %s101, %s102
      %p116 = scmp.eq.s32.totalorder %s24, 1
      %p117 = por %p115, %p116
      %p119 = scmp.ne.s32.totalorder %s102, %s118
      %p120 = scmp.eq.s32.totalorder %s24, 0
      %p121 = por %p119, %p120
      %s122 = ssub.s32 %s25, %s37
      %p123 = scmp.eq.s32.totalorder %s122, 0
      %s125 = sadd.s32 %s124, 1
      %s126 = scalar_select %p123, %s124, %s125
      %p129 = pneg %p123
      %p130 = scmp.eq.s32.totalorder %s18, 1
      %p131 = por %p129, %p130
      %p132 = scmp.ne.s32.totalorder %s124, %s127
      %p133 = scmp.eq.s32.totalorder %s18, 0
      %p134 = por %p132, %p133
      %p135 = scmp.ne.s32.totalorder %s124, %s127
      %p136 = scmp.eq.s32.totalorder %s23, 1
      %p137 = por %p135, %p136
      %p138 = scmp.ne.s32.totalorder %s127, %s128
      %p139 = scmp.eq.s32.totalorder %s23, 0
      %p140 = por %p138, %p139
      %p141 = scmp.ne.s32.totalorder %s127, %s128
      %p142 = scmp.eq.s32.totalorder %s24, 1
      %p143 = por %p141, %p142
      %p145 = scmp.ne.s32.totalorder %s128, %s144
      %p146 = scmp.eq.s32.totalorder %s24, 0
      %p147 = por %p145, %p146
      %p148 = scmp.le.s32.totalorder 1, %s18
      %p149 = scmp.lt.s32.totalorder %s18, 3
      %p150 = pnand %p148, %p149
      %p151 = pneg %p150
      // Predicated region
      $region9: #{tpu_custom_call.1} parent=5 // pred_check
        _
      $region10: #{tpu_custom_call.1} parent=5 // pred_check_branch
        %153 = sbr.rel (%p150) target = $region12
      $region11: #{tpu_custom_call.1} parent=5 // pred_region
        %s154 = ssub.s32 %s18, 1
      $region12: #{tpu_custom_call.1} parent=5 // pred_fallthru
        _
      %p155 = scmp.lt.s32.totalorder %s18, 2
      // Predicated region
      $region13: #{tpu_custom_call.1} parent=5 // pred_check
        %p156 = pneg %p155
      $region14: #{tpu_custom_call.1} parent=5 // pred_check_branch
        %158 = sbr.rel (%p156) target = $region16
      $region15: #{tpu_custom_call.1} parent=5 // pred_region
        // Predicated region
        $region17: #{tpu_custom_call.1} parent=15 // pred_check
          %p159 = pneg %p52
        $region18: #{tpu_custom_call.1} parent=15 // pred_check_branch
          %161 = sbr.rel (%p159) target = $region20
        $region19: #{tpu_custom_call.1} parent=15 // pred_region
          %s162 = sand.u32 %s42, 1
          %s163 = scalar_lea.sflag [#allocation4], %s162
          %s164 = sand.u32 %s42, 1
          %s165 = smul.addr %s164, 32
          %s166 = scalar_lea.vmem [#allocation3], %s165
          %s167 = smul.u32 8, %s26
          %169 = vsyncadd %s163, 0
          %s170 = smul.addr %s25, 8
          %s171 = sadd.s32 %s167, %s170
          %s172 = smul.addr %s171, 4
          %s173 = scalar_lea.hbm %s0, %s172
          %s175 = sshll.u32 %s173, 4
          %s176 = int_to_ptr.hbm [resolvable:$true] %s175
          %s177 = sshll.u32 %s166, 4
          %s178 = int_to_ptr.vmem [resolvable:$true] %s177
          %180 = dma.hbm_to_vmem [thread:$0]  %s176, 512, %s178, %s163
        $region20: #{tpu_custom_call.1} parent=15 // pred_fallthru
          _
        // Predicated region
        $region21: #{tpu_custom_call.1} parent=15 // pred_check
          %p181 = pneg %p80
        $region22: #{tpu_custom_call.1} parent=15 // pred_check_branch
          %183 = sbr.rel (%p181) target = $region24
        $region23: #{tpu_custom_call.1} parent=15 // pred_region
          %s184 = sand.u32 %s18, 1
          %s185 = scalar_lea.sflag [#allocation7], %s184
          %s186 = sand.u32 %s70, 1
          %s187 = smul.addr %s186, 32
          %s188 = scalar_lea.vmem [#allocation6], %s187
          %s189 = smul.u32 8, %s26
          %191 = vsyncadd %s185, 0
          %s192 = smul.addr %s25, 8
          %s193 = sadd.s32 %s189, %s192
          %s194 = smul.addr %s193, 4
          %s195 = scalar_lea.hbm %s1, %s194
          %s197 = sshll.u32 %s195, 4
          %s198 = int_to_ptr.hbm [resolvable:$true] %s197
          %s199 = sshll.u32 %s188, 4
          %s200 = int_to_ptr.vmem [resolvable:$true] %s199
          %202 = dma.hbm_to_vmem [thread:$0]  %s198, 512, %s200, %s185
        $region24: #{tpu_custom_call.1} parent=15 // pred_fallthru
          _
        // Predicated region
        $region25: #{tpu_custom_call.1} parent=15 // pred_check
          %p203 = pneg %p108
        $region26: #{tpu_custom_call.1} parent=15 // pred_check_branch
          %205 = sbr.rel (%p203) target = $region28
        $region27: #{tpu_custom_call.1} parent=15 // pred_region
          %s206 = sand.u32 %s18, 1
          %s207 = scalar_lea.sflag [#allocation7], %s206
          %s208 = sand.u32 %s98, 1
          %s209 = smul.addr %s208, 8
          %s210 = scalar_lea.vmem [#allocation8], %s209
          %s211 = smul.u32 8, %s26
          %213 = vsyncadd %s207, 0
          %s214 = smul.addr %s25, 8
          %s215 = sadd.s32 %s211, %s214
          %s216 = scalar_lea.hbm %s2, %s215
          %s218 = sshll.u32 %s216, 4
          %s219 = int_to_ptr.hbm [resolvable:$true] %s218
          %s220 = sshll.u32 %s210, 4
          %s221 = int_to_ptr.vmem [resolvable:$true] %s220
          %223 = dma.hbm_to_vmem [thread:$0]  %s219, 128, %s221, %s207
        $region28: #{tpu_custom_call.1} parent=15 // pred_fallthru
          _
      $region16: #{tpu_custom_call.1} parent=5 // pred_fallthru
        _
      %p224 = scmp.le.s32.totalorder 1, %s18
      %p225 = scmp.lt.s32.totalorder %s18, 3
      %p226 = pnand %p224, %p225
      %p227 = pneg %p226
      // Predicated region
      $region29: #{tpu_custom_call.1} parent=5 // pred_check
        _
      $region30: #{tpu_custom_call.1} parent=5 // pred_check_branch
        %229 = sbr.rel (%p226) target = $region32
      $region31: #{tpu_custom_call.1} parent=5 // pred_region
        %s230 = ssub.s32 %s18, 1
        %s231 = sand.u32 %s45, 1
        %s232 = scalar_lea.sflag [#allocation4], %s231
        %s233 = sand.u32 %s45, 1
        %s234 = smul.addr %s233, 32
        %s235 = scalar_lea.vmem [#allocation3], %s234
        // Predicated region
        $region33: #{tpu_custom_call.1} parent=31 // pred_check
          %p236 = pneg %p58
        $region34: #{tpu_custom_call.1} parent=31 // pred_check_branch
          %238 = sbr.rel (%p236) target = $region36
        $region35: #{tpu_custom_call.1} parent=31 // pred_region
          %240 = dma.done %s232, 512
        $region36: #{tpu_custom_call.1} parent=31 // pred_fallthru
          _
        %s241 = sand.u32 %s23, 1
        %s242 = scalar_lea.sflag [#allocation7], %s241
        %s243 = sand.u32 %s73, 1
        %s244 = smul.addr %s243, 32
        %s245 = scalar_lea.vmem [#allocation6], %s244
        // Predicated region
        $region37: #{tpu_custom_call.1} parent=31 // pred_check
          %p246 = pneg %p86
        $region38: #{tpu_custom_call.1} parent=31 // pred_check_branch
          %248 = sbr.rel (%p246) target = $region40
        $region39: #{tpu_custom_call.1} parent=31 // pred_region
          %250 = dma.done %s242, 512
        $region40: #{tpu_custom_call.1} parent=31 // pred_fallthru
          _
        %s251 = sand.u32 %s23, 1
        %s252 = scalar_lea.sflag [#allocation7], %s251
        %s253 = sand.u32 %s101, 1
        %s254 = smul.addr %s253, 8
        %s255 = scalar_lea.vmem [#allocation8], %s254
        // Predicated region
        $region41: #{tpu_custom_call.1} parent=31 // pred_check
          %p256 = pneg %p114
        $region42: #{tpu_custom_call.1} parent=31 // pred_check_branch
          %258 = sbr.rel (%p256) target = $region44
        $region43: #{tpu_custom_call.1} parent=31 // pred_region
          %260 = dma.done %s252, 128
        $region44: #{tpu_custom_call.1} parent=31 // pred_fallthru
          _
        %s261 = sand.u32 %s45, 1
        %s262 = scalar_lea.sflag [#allocation4], %s261
        %s263 = sand.u32 %s45, 1
        %s264 = smul.addr %s263, 32
        %s265 = scalar_lea.vmem [#allocation3], %s264
        %p266 = pneg %p58
        %p267 = pneg %p55
        %s268 = sand.u32 %s23, 1
        %s269 = scalar_lea.sflag [#allocation7], %s268
        %s270 = sand.u32 %s73, 1
        %s271 = smul.addr %s270, 32
        %s272 = scalar_lea.vmem [#allocation6], %s271
        %p273 = pneg %p86
        %p274 = pneg %p83
        %s275 = sand.u32 %s23, 1
        %s276 = scalar_lea.sflag [#allocation7], %s275
        %s277 = sand.u32 %s101, 1
        %s278 = smul.addr %s277, 8
        %s279 = scalar_lea.vmem [#allocation8], %s278
        %p280 = pneg %p114
        %p281 = pneg %p111
        %p282 = pneg %p140
        %p283 = pneg %p137
        %s284 = sand.u32 %s127, 1
        %s285 = scalar_lea.sflag [#allocation5], %s284
        %s286 = sand.u32 %s127, 1
        %s287 = scalar_lea.vmem [#allocation9], %s286
        %s288 = smul.u32 8, %s28
        %s289 = smul.u32 8, %s28
        %s290 = smul.u32 8, %s28
        %p291 = scmp.eq.s32.totalorder %s28, 0
        // Predicated region
        $region45: #{tpu_custom_call.1} parent=31 // pred_check
          %p292 = pneg %p291
        $region46: #{tpu_custom_call.1} parent=31 // pred_check_branch
          %294 = sbr.rel (%p292) target = $region48
        $region47: #{tpu_custom_call.1} parent=31 // pred_region
          %295 = vst [vmem:[#allocation2] sm:$0xff] 0.0
          %296 = vst [vmem:[#allocation2 + $0x8] sm:$0xff] 0.0
          %297 = vst [vmem:[#allocation2 + $0x10] sm:$0xff] 0.0
          %298 = vst [vmem:[#allocation2 + $0x18] sm:$0xff] 0.0
        $region48: #{tpu_custom_call.1} parent=31 // pred_fallthru
          _
        %v299 = vld [vmem:[%s235] sm:$0xff]
        %v300 = vld [vmem:[%s235 + $0x8] sm:$0xff]
        %v301 = vld [vmem:[%s235 + $0x10] sm:$0xff]
        %v302 = vld [vmem:[%s235 + $0x18] sm:$0xff]
        %v303 = vld [vmem:[%s245] sm:$0xff]
        %v304 = vld [vmem:[%s245 + $0x8] sm:$0xff]
        %v305 = vld [vmem:[%s245 + $0x10] sm:$0xff]
        %v306 = vld [vmem:[%s245 + $0x18] sm:$0xff]
        %v307 = vld [vmem:[%s255] sm:$0xff]
        %v308 = vlaneseq
        %v309 = vshrl.u32 %v308, 7
        %vm310 = vcmp.eq.s32.totalorder %v309, 1
        %v311 = vsel %vm310, 0.19730987, 0.18194012
        %v312 = vsel %vm310, 3.9250143, 3.6724875
        %vm313 = vcmp.eq.s32.totalorder %v309, 2
        %v314 = vsel %vm313, 0.19899204, %v311
        %v315 = vsel %vm313, 3.9931426, %v312
        %vm316 = vcmp.eq.s32.totalorder %v309, 3
        %v317 = vsel %vm316, 0.36337873, %v314
        %v318 = vsel %vm316, 4.936858, %v315
        %v321 = vunpack.c.l.s4 839922192
        %v322 = vunpack.c.0.s8 %v321
        %v323 = vperm.slane %v317, %v322
        %v325 = vsub.f32 %v299, %v323
        %v326 = vsub.f32 %v300, %v323
        %v327 = vsub.f32 %v301, %v323
        %v328 = vsub.f32 %v302, %v323
        %v331 = vunpack.c.l.s4 839922192
        %v332 = vunpack.c.0.s8 %v331
        %v333 = vperm.slane %v318, %v332
        %v335 = vmul.f32 %v325, %v333
        %v336 = vmul.f32 %v326, %v333
        %v337 = vmul.f32 %v327, %v333
        %v338 = vmul.f32 %v328, %v333
        %v339 = vsub.f32 %v303, %v323
        %v340 = vsub.f32 %v304, %v323
        %v341 = vsub.f32 %v305, %v323
        %v342 = vsub.f32 %v306, %v323
        %v343 = vmul.f32 %v339, %v333
        %v344 = vmul.f32 %v340, %v333
        %v345 = vmul.f32 %v341, %v333
        %v346 = vmul.f32 %v342, %v333
        %v347 = vsub.f32 %v335, %v343
        %v348 = vsub.f32 %v336, %v344
        %v349 = vsub.f32 %v337, %v345
        %v350 = vsub.f32 %v338, %v346
        %v352 = vperm.slane %v307, 0
        %v353 = vperm.slane %v307, 1
        %v354 = vperm.slane %v307, 2
        %v355 = vperm.slane %v307, 3
        %v356 = vperm.slane %v307, 4
        %v357 = vperm.slane %v307, 5
        %v358 = vperm.slane %v307, 6
        %v359 = vperm.slane %v307, 7
        %v360 = vrot.slane %v353, 4
        %v361 = vrot.slane %v355, 4
        %v362 = vrot.slane %v357, 4
        %v363 = vrot.slane %v359, 4
        %vm364 = vcmask 1043456
        %v365 = vsel %vm364, %v352, %v360
        %v366 = vsel %vm364, %v354, %v361
        %v367 = vsel %vm364, %v356, %v362
        %v368 = vsel %vm364, %v358, %v363
        %v373 = vmul.f32 %v347, %v365
        %v374 = vmul.f32 %v348, %v366
        %v375 = vmul.f32 %v349, %v367
        %v376 = vmul.f32 %v350, %v368
        %v377 = vand.u32 2147483647, %v373
        %v378 = vand.u32 2147483647, %v374
        %v379 = vand.u32 2147483647, %v375
        %v380 = vand.u32 2147483647, %v376
        %v381 = vld [vmem:[#allocation2] sm:$0xff]
        %v382 = vld [vmem:[#allocation2 + $0x8] sm:$0xff]
        %v383 = vld [vmem:[#allocation2 + $0x10] sm:$0xff]
        %v384 = vld [vmem:[#allocation2 + $0x18] sm:$0xff]
        %v385 = vadd.f32 %v381, %v377
        %v386 = vadd.f32 %v382, %v378
        %v387 = vadd.f32 %v383, %v379
        %v388 = vadd.f32 %v384, %v380
        %389 = vst [vmem:[#allocation2] sm:$0xff] %v385
        %390 = vst [vmem:[#allocation2 + $0x8] sm:$0xff] %v386
        %391 = vst [vmem:[#allocation2 + $0x10] sm:$0xff] %v387
        %392 = vst [vmem:[#allocation2 + $0x18] sm:$0xff] %v388
        // Predicated region
        $region49: #{tpu_custom_call.1} parent=31 // pred_check
          %p393 = pneg %p291
        $region50: #{tpu_custom_call.1} parent=31 // pred_check_branch
          %395 = sbr.rel (%p393) target = $region52
        $region51: #{tpu_custom_call.1} parent=31 // pred_region
          %v396 = vld [vmem:[#allocation2] sm:$0xff]
          %v397 = vld [vmem:[#allocation2 + $0x8] sm:$0xff]
          %v398 = vld [vmem:[#allocation2 + $0x10] sm:$0xff]
          %v399 = vld [vmem:[#allocation2 + $0x18] sm:$0xff]
          %404 = vst [vmem:[#allocation1] ss:$2 sm:$0xff] %v396
          %s405 = scalar_lea.vmem [#allocation1], 16
          %406 = vst [vmem:[%s405] ss:$2 sm:$0xff] %v397
          %s407 = scalar_lea.vmem [#allocation1], 32
          %408 = vst [vmem:[%s407] ss:$2 sm:$0xff] %v398
          %s409 = scalar_lea.vmem [#allocation1], 48
          %410 = vst [vmem:[%s409] ss:$2 sm:$0xff] %v399
          %v411 = vld.sshfl [vmem:[#allocation1] sm:$0xff pattern:$0x75316420]
          %v412 = vld.sshfl [vmem:[#allocation1 + $0x8] sm:$0xff pattern:$0x75316420]
          %v413 = vld.sshfl [vmem:[#allocation1 + $0x10] sm:$0xff pattern:$0x75316420]
          %v414 = vld.sshfl [vmem:[#allocation1 + $0x18] sm:$0xff pattern:$0x75316420]
          %v415 = vld.sshfl [vmem:[#allocation1 + $0x20] sm:$0xff pattern:$0x75316420]
          %v416 = vld.sshfl [vmem:[#allocation1 + $0x28] sm:$0xff pattern:$0x75316420]
          %v417 = vld.sshfl [vmem:[#allocation1 + $0x30] sm:$0xff pattern:$0x75316420]
          %v418 = vld.sshfl [vmem:[#allocation1 + $0x38] sm:$0xff pattern:$0x75316420]
          %v427 = vsel %vm364, %v411, 0.0
          %v428 = vsel %vm364, %v412, 0.0
          %v429 = vadd.f32 %v427, %v428
          %v430 = vsel %vm364, %v413, 0.0
          %v431 = vadd.f32 %v429, %v430
          %v432 = vsel %vm364, %v414, 0.0
          %v433 = vadd.f32 %v431, %v432
          %v434 = vsel %vm364, %v415, 0.0
          %v435 = vadd.f32 %v433, %v434
          %v436 = vsel %vm364, %v416, 0.0
          %v437 = vadd.f32 %v435, %v436
          %v438 = vsel %vm364, %v417, 0.0
          %v439 = vadd.f32 %v437, %v438
          %v440 = vsel %vm364, %v418, 0.0
          %v441 = vadd.f32 %v439, %v440
          %442 = vadd.xlane.f32.xlu0 %v441
          %v443 = vpop.xlane.xlu0 %442
          %v445 = vlaneseq
          %v446 = vand.u32 %v445, 127
          %v447 = vperm.slane %v443, %v446
          %vm449 = vcmask 24576
          %450 = vst.msk [vmem:[%s287] sm:$0x1] %vm449, %v447
        $region52: #{tpu_custom_call.1} parent=31 // pred_fallthru
          _
        %s451 = sand.u32 %s127, 1
        %s452 = scalar_lea.sflag [#allocation5], %s451
        %s453 = sand.u32 %s127, 1
        %s454 = scalar_lea.vmem [#allocation9], %s453
        // Predicated region
        $region53: #{tpu_custom_call.1} parent=31 // pred_check
          %p455 = pneg %p137
        $region54: #{tpu_custom_call.1} parent=31 // pred_check_branch
          %457 = sbr.rel (%p455) target = $region56
        $region55: #{tpu_custom_call.1} parent=31 // pred_region
          %459 = vsyncadd %s452, 0
          %s460 = scalar_lea.hbm %s3, %s27
          %s462 = sshll.u32 %s454, 4
          %s463 = int_to_ptr.vmem [resolvable:$true] %s462
          %s464 = sshll.u32 %s460, 4
          %s465 = int_to_ptr.hbm [resolvable:$true] %s464
          %467 = dma.vmem_to_hbm [thread:$0]  %s463, 16, %s465, %s452
        $region56: #{tpu_custom_call.1} parent=31 // pred_fallthru
          _
      $region32: #{tpu_custom_call.1} parent=5 // pred_fallthru
        _
      %p468 = scmp.le.s32.totalorder 2, %s18
      // Predicated region
      $region57: #{tpu_custom_call.1} parent=5 // pred_check
        %p469 = pneg %p468
      $region58: #{tpu_custom_call.1} parent=5 // pred_check_branch
        %471 = sbr.rel (%p469) target = $region60
      $region59: #{tpu_custom_call.1} parent=5 // pred_region
        %s472 = ssub.s32 %s18, 2
        // Predicated region
        $region61: #{tpu_custom_call.1} parent=59 // pred_check
          %p473 = pneg %p143
        $region62: #{tpu_custom_call.1} parent=59 // pred_check_branch
          %475 = sbr.rel (%p473) target = $region64
        $region63: #{tpu_custom_call.1} parent=59 // pred_region
          %s476 = sand.u32 %s128, 1
          %s477 = scalar_lea.sflag [#allocation5], %s476
          %s478 = sand.u32 %s128, 1
          %s479 = scalar_lea.vmem [#allocation9], %s478
          %481 = dma.done %s477, 16
        $region64: #{tpu_custom_call.1} parent=59 // pred_fallthru
          _
      $region60: #{tpu_custom_call.1} parent=5 // pred_fallthru
        _
    $region6: #{tpu_custom_call.1} parent=1 // loop_footer
      %s22 = sadd.s32 1, %s18
    $region7: #{tpu_custom_call.1} parent=1 // loop_footer_branch
      %17 = sbr.rel target = $region3
    $region8: #{tpu_custom_call.1} parent=1 // loop_exit
      _
    %482 = vsyncpa [#allocation4], 1
    %s483 = scalar_lea.sflag [#allocation4], 1
    %484 = vsyncpa %s483, 1
    %485 = vsyncpa [#allocation7], 1
    %s486 = scalar_lea.sflag [#allocation7], 1
    %487 = vsyncpa %s486, 1
    %488 = vsyncpa [#allocation5], 1
    %s489 = scalar_lea.sflag [#allocation5], 1
    %490 = vsyncpa %s489, 1

</llo_original>
